<compile_context>
chip_gen: v7x
topology: tpu7x:2x2x1
jax: 0.10.0
libtpu: 0.0.40
codegen_flags: <defaults>
</compile_context>

<pallas_src>
import math

import jax
import jax.numpy as jnp
from jax.experimental import pallas as pl
from jax.experimental.pallas import tpu as pltpu


def _round_up(v, m):
    return ((v + m - 1) // m) * m


def prep_kernel(adj_ref, x_ref, w_ref, dd_ref, ssc_ref, deg_ref):
    """Pass A: per row-block, reduce degree across adj column tiles and emit
    dd = deg^{-1/2} and the dd-scaled support dd * (x @ w)."""
    k = pl.program_id(1)

    @pl.when(k == 0)
    def _():
        deg_ref[...] = jnp.zeros_like(deg_ref)

    # Degree from the original adjacency: sum_j (adj_ij > 0).  XLU reduce.
    deg_ref[...] += jnp.sum((adj_ref[...] > 0).astype(jnp.float32),
                            axis=1, keepdims=True)

    @pl.when(k == pl.num_programs(1) - 1)
    def _():
        # Matches torch deg ** -0.5 (inf for isolated nodes, as in the module).
        dd = jax.lax.rsqrt(deg_ref[...])                       # (tm, 1) f32
        dd_ref[...] = dd
        s = jnp.dot(x_ref[...], w_ref[...],
                    preferred_element_type=jnp.float32)        # (tm, Fp) f32
        ssc_ref[...] = (dd * s).astype(ssc_ref.dtype)          # bf16 for streaming


def agg_kernel(adj_ref, sk_ref, si_ref, dd_ref, b_ref, out_ref, acc_ref):
    """Pass B: acc_i += adj_tile @ (dd ⊙ S) tile;  finalize with
    out_i = dd_i * (acc_i + dd_i*S_i) + bias."""
    k = pl.program_id(1)

    @pl.when(k == 0)
    def _():
        acc_ref[...] = jnp.zeros_like(acc_ref)

    # Pure MXU accumulate in the inner loop (bf16 operands, f32 accumulator).
    acc_ref[...] += jnp.dot(adj_ref[...], sk_ref[...],
                            preferred_element_type=jnp.float32)

    @pl.when(k == pl.num_programs(1) - 1)
    def _():
        dd = dd_ref[...]                                       # (tm, 1) f32
        out_ref[...] = (dd * (acc_ref[...] + si_ref[...].astype(jnp.float32))
                        + b_ref[...])


def graph_convolution(x, adj, weight, bias, *, tm=256, tk=512):
    """GCN layer forward (inference).  adj is streamed in bf16 tiles; support is
    computed once and kept small/resident; output is lane-dense (F_out padded
    to 128 and sliced back)."""
    n, f_in = x.shape
    f_out = weight.shape[1]

    # --- Tile / padding plan ---------------------------------------------
    np0 = _round_up(n, 128)
    tm = min(tm, np0)                       # multiples of 128 after clamp
    tk = min(tk, np0)
    lcm = tm * tk // math.gcd(tm, tk)
    np_ = _round_up(n, lcm)                 # N padded so grid divides evenly
    fp_out = _round_up(f_out, 128)          # lane-dense output columns
    grid = (np_ // tm, np_ // tk)

    # --- Pad operands (zeros everywhere; padded nodes get a self-loop so their
    #     degree is 1 -> dd finite; they never touch real rows since their
    #     off-diagonal entries are zero and their features are zero). ---------
    x_p = jnp.zeros((np_, f_in), jnp.float32).at[:n, :].set(x.astype(jnp.float32))
    w_p = jnp.zeros((f_in, fp_out), jnp.float32).at[:, :f_out].set(
        weight.astype(jnp.float32))
    b_p = jnp.zeros((1, fp_out), jnp.float32).at[0, :f_out].set(
        bias.astype(jnp.float32))

    adj_p = jnp.zeros((np_, np_), jnp.float32).at[:n, :n].set(
        adj.astype(jnp.float32))
    pad_diag = (jnp.arange(np_) >= n).astype(jnp.float32)
    adj_p = adj_p + jnp.diag(pad_diag)
    adj_bf16 = adj_p.astype(jnp.bfloat16)   # halve HBM traffic of the dominant term

    # --- VMEM budgets (double-buffered inputs/outputs + scratch), 2x headroom.
    vmem_a = max(8 << 20, 2 * (2 * tm * tk * 2 + 2 * tm * f_in * 4
                               + 2 * f_in * fp_out * 4 + 2 * tm * 4
                               + 2 * tm * fp_out * 2 + tm * 4))
    vmem_b = max(8 << 20, 2 * (2 * tm * tk * 2 + 2 * tk * fp_out * 2
                               + 2 * tm * fp_out * 2 + 2 * tm * 4
                               + 2 * fp_out * 4 + 2 * tm * fp_out * 4
                               + tm * fp_out * 4))

    # --- Pass A: degree reduce (fused with x @ w) -> dd, dd*(x@w) ------------
    dd, s_scaled = pl.pallas_call(
        prep_kernel,
        out_shape=(jax.ShapeDtypeStruct((np_, 1), jnp.float32),
                   jax.ShapeDtypeStruct((np_, fp_out), jnp.bfloat16)),
        grid_spec=pltpu.PrefetchScalarGridSpec(
            num_scalar_prefetch=0,
            grid=grid,
            in_specs=[
                pl.BlockSpec((tm, tk), lambda i, k: (i, k)),         # adj tile
                pl.BlockSpec((tm, f_in), lambda i, k: (i, 0)),       # x rows
                pl.BlockSpec((f_in, fp_out), lambda i, k: (0, 0)),   # weight
            ],
            out_specs=[
                pl.BlockSpec((tm, 1), lambda i, k: (i, 0)),          # dd
                pl.BlockSpec((tm, fp_out), lambda i, k: (i, 0)),     # dd * (x@w)
            ],
            scratch_shapes=[pltpu.VMEM((tm, 1), jnp.float32)],
        ),
        compiler_params=pltpu.CompilerParams(
            dimension_semantics=("parallel", "arbitrary"),
            vmem_limit_bytes=vmem_a,
        ),
    )(adj_bf16, x_p, w_p)

    # --- Pass B: out = dd ⊙ (adj @ (dd ⊙ S)) + dd ⊙ (dd ⊙ S) + bias ----------
    out_p = pl.pallas_call(
        agg_kernel,
        out_shape=jax.ShapeDtypeStruct((np_, fp_out), jnp.float32),
        grid_spec=pltpu.PrefetchScalarGridSpec(
            num_scalar_prefetch=0,
            grid=grid,
            in_specs=[
                pl.BlockSpec((tm, tk), lambda i, k: (i, k)),         # adj tile
                pl.BlockSpec((tk, fp_out), lambda i, k: (k, 0)),     # (dd⊙S)[k-slice]
                pl.BlockSpec((tm, fp_out), lambda i, k: (i, 0)),     # (dd⊙S)[i-slice]
                pl.BlockSpec((tm, 1), lambda i, k: (i, 0)),          # dd rows
                pl.BlockSpec((1, fp_out), lambda i, k: (0, 0)),      # bias
            ],
            out_specs=pl.BlockSpec((tm, fp_out), lambda i, k: (i, 0)),
            scratch_shapes=[pltpu.VMEM((tm, fp_out), jnp.float32)],
        ),
        compiler_params=pltpu.CompilerParams(
            dimension_semantics=("parallel", "arbitrary"),
            vmem_limit_bytes=vmem_b,
        ),
    )(adj_bf16, s_scaled, s_scaled, dd, b_p)

    return out_p[:n, :f_out]


if __name__ == "__main__":
    # Small-but-nontrivial shapes: 200 nodes exercises padding (200 -> 256) and
    # a (2, 2) tiled grid with the k-reduction / accumulator path.
    N, F_IN, F_OUT = 200, 32, 16
    DROPOUT_P = 0.5  # TODO(synk): F.dropout is training-only; kernel runs inference (identity).

    key = jax.random.PRNGKey(0)
    kx, kadj, kw, kb = jax.random.split(key, 4)

    x = jax.random.normal(kx, (N, F_IN), dtype=jnp.float32)
    # Strictly positive adjacency so every node has nonzero degree (no inf in D^{-1/2}).
    adj = jax.random.uniform(kadj, (N, N), dtype=jnp.float32, minval=0.1, maxval=1.0)

    # Parameter init mirroring reset_parameters(): U(-stdv, stdv), stdv = 1/sqrt(out_features)
    stdv = 1.0 / math.sqrt(F_OUT)
    weight = jax.random.uniform(kw, (F_IN, F_OUT), dtype=jnp.float32,
                                minval=-stdv, maxval=stdv)
    bias = jax.random.uniform(kb, (F_OUT,), dtype=jnp.float32,
                              minval=-stdv, maxval=stdv)

    # Small tiles here so the toy graph still runs a multi-tile grid.
    out = graph_convolution(x, adj, weight, bias, tm=128, tk=128)
    out = jax.block_until_ready(out)

    # Reference (f32) of the PyTorch forward.
    deg = jnp.sum((adj > 0.0).astype(jnp.float32), axis=1)
    ddr = deg ** -0.5
    a_tilda = ddr[:, None] * (adj + jnp.eye(N, dtype=jnp.float32)) * ddr[None, :]
    ref = a_tilda @ (x @ weight) + bias

    assert out.shape == (N, F_OUT)
    # adj / support stream in bf16 (f32 accumulate) -> relaxed tolerance vs f32 ref.
    assert bool(jnp.allclose(out, ref, atol=2e-2, rtol=2e-2)), "mismatch vs reference"

    print("KERNEL_OK")
</pallas_src>

<mosaic_0001>
module attributes {stable_mosaic.version = 11 : i64} {
  func.func @prep_kernel(%arg0: i32, %arg1: i32, %arg2: memref<128x128xbf16, #tpu.memory_space<vmem>>, %arg3: memref<128x32xf32, #tpu.memory_space<vmem>>, %arg4: memref<32x128xf32, #tpu.memory_space<vmem>>, %arg5: memref<128x1xf32, #tpu.memory_space<vmem>>, %arg6: memref<128x128xbf16, #tpu.memory_space<vmem>>, %arg7: memref<128x1xf32, #tpu.memory_space<vmem>>) attributes {dimension_semantics = [#tpu.dimension_semantics<parallel>, #tpu.dimension_semantics<arbitrary>], iteration_bounds = array<i64: 2, 2>, scalar_prefetch = 0 : i64, scratch_operands = 1 : i64, tpu.core_type = #tpu.core_type<tc>, window_params = [{transform_indices = @transform_0, window_bounds = array<i64: 128, 128>}, {transform_indices = @transform_1, window_bounds = array<i64: 128, 32>}, {pipeline_mode = #tpu.pipeline_mode<synchronous>, transform_indices = @transform_2, window_bounds = array<i64: 32, 128>}, {transform_indices = @transform_3, window_bounds = array<i64: 128, 1>}, {transform_indices = @transform_4, window_bounds = array<i64: 128, 128>}]} {
    %c0_i32 = arith.constant 0 : i32
    %0 = arith.cmpi eq, %arg1, %c0_i32 : i32
    %1 = arith.extui %0 : i1 to i32
    %c0_i32_0 = arith.constant 0 : i32
    %2 = arith.cmpi ne, %1, %c0_i32_0 : i32
    scf.if %2 {
      %cst_8 = arith.constant 0.000000e+00 : f32
      %16 = vector.broadcast %cst_8 : f32 to vector<128x1xf32>
      %c0_9 = arith.constant 0 : index
      %c0_10 = arith.constant 0 : index
      %17 = vector.load %arg7[%c0_9, %c0_10] : memref<128x1xf32, #tpu.memory_space<vmem>>, vector<128x1xf32>
      tpu.vector_store %arg7[%c0_9, %c0_10], %16 {strides = array<i32>} : memref<128x1xf32, #tpu.memory_space<vmem>>, vector<128x1xf32>,
    } else {
    }
    %c0 = arith.constant 0 : index
    %c0_1 = arith.constant 0 : index
    %3 = vector.load %arg7[%c0, %c0_1] : memref<128x1xf32, #tpu.memory_space<vmem>>, vector<128x1xf32>
    %c0_2 = arith.constant 0 : index
    %c0_3 = arith.constant 0 : index
    %4 = vector.load %arg2[%c0_2, %c0_3] : memref<128x128xbf16, #tpu.memory_space<vmem>>, vector<128x128xbf16>
    %cst = arith.constant 0.000000e+00 : bf16
    %5 = vector.broadcast %cst : bf16 to vector<128x128xbf16>
    %6 = arith.cmpf ogt, %4, %5 : vector<128x128xbf16>
    %7 = arith.extui %6 : vector<128x128xi1> to vector<128x128xi32>
    %8 = arith.sitofp %7 : vector<128x128xi32> to vector<128x128xf32>
    %cst_4 = arith.constant dense<0.000000e+00> : vector<128xf32>
    %9 = vector.multi_reduction <add>, %8, %cst_4 [1] : vector<128x128xf32> to vector<128xf32>
    %10 = vector.shape_cast %9 : vector<128xf32> to vector<128x1xf32>
    %11 = arith.addf %3, %10 : vector<128x1xf32>
    %c0_5 = arith.constant 0 : index
    %c0_6 = arith.constant 0 : index
    %12 = vector.load %arg7[%c0_5, %c0_6] : memref<128x1xf32, #tpu.memory_space<vmem>>, vector<128x1xf32>
    tpu.vector_store %arg7[%c0_5, %c0_6], %11 {strides = array<i32>} : memref<128x1xf32, #tpu.memory_space<vmem>>, vector<128x1xf32>,
    %c1_i32 = arith.constant 1 : i32
    %13 = arith.cmpi eq, %arg1, %c1_i32 : i32
    %14 = arith.extui %13 : i1 to i32
    %c0_i32_7 = arith.constant 0 : i32
    %15 = arith.cmpi ne, %14, %c0_i32_7 : i32
    scf.if %15 {
      %c0_8 = arith.constant 0 : index
      %c0_9 = arith.constant 0 : index
      %16 = vector.load %arg7[%c0_8, %c0_9] : memref<128x1xf32, #tpu.memory_space<vmem>>, vector<128x1xf32>
      %17 = math.rsqrt %16 : vector<128x1xf32>
      %c0_10 = arith.constant 0 : index
      %c0_11 = arith.constant 0 : index
      %18 = vector.load %arg5[%c0_10, %c0_11] : memref<128x1xf32, #tpu.memory_space<vmem>>, vector<128x1xf32>
      tpu.vector_store %arg5[%c0_10, %c0_11], %17 {strides = array<i32>} : memref<128x1xf32, #tpu.memory_space<vmem>>, vector<128x1xf32>,
      %c0_12 = arith.constant 0 : index
      %c0_13 = arith.constant 0 : index
      %19 = vector.load %arg3[%c0_12, %c0_13] : memref<128x32xf32, #tpu.memory_space<vmem>>, vector<128x32xf32>
      %c0_14 = arith.constant 0 : index
      %c0_15 = arith.constant 0 : index
      %20 = vector.load %arg4[%c0_14, %c0_15] : memref<32x128xf32, #tpu.memory_space<vmem>>, vector<32x128xf32>
      %cst_16 = arith.constant dense<0.000000e+00> : vector<128x128xf32>
      %21 = tpu.matmul %19, %20, %cst_16 {dimension_numbers = #tpu.dot_dimension_numbers<[1], [0], [0], [1], [0, 0, 1, 1], [], []>} : vector<128x32xf32>, vector<32x128xf32>, vector<128x128xf32> -> vector<128x128xf32>
      %22 = vector.broadcast %17 : vector<128x1xf32> to vector<128x128xf32>
      %23 = arith.mulf %22, %21 : vector<128x128xf32>
      %24 = arith.truncf %23 : vector<128x128xf32> to vector<128x128xbf16>
      %c0_17 = arith.constant 0 : index
      %c0_18 = arith.constant 0 : index
      %25 = vector.load %arg6[%c0_17, %c0_18] : memref<128x128xbf16, #tpu.memory_space<vmem>>, vector<128x128xbf16>
      tpu.vector_store %arg6[%c0_17, %c0_18], %24 {strides = array<i32>} : memref<128x128xbf16, #tpu.memory_space<vmem>>, vector<128x128xbf16>,
    } else {
    }
    return
  }
  func.func @transform_0(%arg0: i32, %arg1: i32) -> (i32, i32) {
    %c0_i32 = arith.constant 0 : i32
    return %arg0, %arg1 : i32, i32
  }
  func.func @transform_1(%arg0: i32, %arg1: i32) -> (i32, i32) {
    %c0_i32 = arith.constant 0 : i32
    %c0_i32_0 = arith.constant 0 : i32
    return %arg0, %c0_i32 : i32, i32
  }
  func.func @transform_2(%arg0: i32, %arg1: i32) -> (i32, i32) {
    %c0_i32 = arith.constant 0 : i32
    %c0_i32_0 = arith.constant 0 : i32
    %c0_i32_1 = arith.constant 0 : i32
    return %c0_i32, %c0_i32_0 : i32, i32
  }
  func.func @transform_3(%arg0: i32, %arg1: i32) -> (i32, i32) {
    %c0_i32 = arith.constant 0 : i32
    %c0_i32_0 = arith.constant 0 : i32
    return %arg0, %c0_i32 : i32, i32
  }
  func.func @transform_4(%arg0: i32, %arg1: i32) -> (i32, i32) {
    %c0_i32 = arith.constant 0 : i32
    %c0_i32_0 = arith.constant 0 : i32
    return %arg0, %c0_i32 : i32, i32
  }
}

</mosaic_0001>

<llo_original>
// kernel: tpu_custom_call.1
$region0: #{tpu_custom_call.1}
  #allocation0 [shape = 'u32[]', space=smem, size = 0x4, offset = 0x4, fixed_abs, tag = 'smem constant byte address 0x4 - core index']
  #allocation1 [shape = 'u32[144,128]{1,0:T(1,128)}', space=vmem, size = 0x12000, scoped, tag = 'internal scratch']
  #allocation2 [shape = 'f32[128,1]{1,0:T(8,128)}', space=vmem, size = 0x10000, scoped, tag = 'scratch operand']
  %s0 = inlined_call_operand.vmem [shape: bf16[256,256], index: 0, kind: input, shape index: {}]
  %s1 = inlined_call_operand.vmem [shape: f32[256,32], index: 1, kind: input, shape index: {}]
  %s2 = inlined_call_operand.vmem [shape: f32[32,128], index: 2, kind: input, shape index: {}]
  %s3 = inlined_call_operand.vmem [shape: f32[256,1], index: 3, kind: output, shape index: {0}]
  %s4 = inlined_call_operand.hbm [shape: bf16[256,128], index: 4, kind: output, shape index: {1}]
  %5 = xla_tuple %s3, %s4
  %s6 = sld [smem:[#allocation0]]
  $region102: #{tpu_custom_call.1} parent=0
    _
  %s8 = ssub.s32 1, %s6
  %s9 = scalar_select 0, %s8, %s6
  $region1: #{tpu_custom_call.1} parent=0
    #allocation3 [shape = 'u8[65536]{0}', space=vmem, size = 0x10000, scoped, tag = 'input window, operand 0']
    #allocation4 [shape = 'u8[65536]{0}', space=vmem, size = 0x10000, scoped, tag = 'output window, operand 1']
    #allocation5 [shape = 's32[2]{0}', space=sflag, size = 0x8, scoped, tag = 'scoped memory for tpu_custom_call.1']
    %10 = vsyncpa [#allocation5], 0
    %s11 = scalar_lea.sflag [#allocation5], 1
    %12 = vsyncpa %s11, 0
    loop: start=0, step=1, limit=6
    $region2: #{tpu_custom_call.1} parent=1 // loop_pre_header
      _
    $region3: #{tpu_custom_call.1} parent=1 // loop_header
      %s14 = sphi 0, %s18
      %p15 = scmp.ge.s32.totalorder %s14, 6
      %s21 = sphi 0, %s33
      %s22 = sphi 0, %s29
      %s23 = sphi 0, %s21
      %s24 = sphi 0, %s22
      %s25 = sphi 0, %s23
      %s26 = sphi 0, %s24
      %s38 = sphi 0, %s40
      %s41 = sphi 0, %s38
      %s42 = sphi 0, %s41
      %s58 = sphi 0, %s42
      %s64 = sphi 0, %s66
      %s67 = sphi 0, %s64
      %s68 = sphi 0, %s67
      %s84 = sphi 0, %s68
      %s88 = sphi 0, %s88
      %s90 = sphi 0, %s88
      %s91 = sphi 0, %s90
      %s105 = sphi 0, %s91
      %s111 = sphi 0, %s113
      %s114 = sphi 0, %s111
      %s115 = sphi 0, %s114
      %s131 = sphi 0, %s115
      %s137 = sphi 0, %s139
      %s140 = sphi 0, %s137
      %s141 = sphi 0, %s140
      %s157 = sphi 0, %s141
    $region4: #{tpu_custom_call.1} parent=1 // loop_header_branch
      %17 = sbr.rel (%p15) target = $region8
    $region5: #{tpu_custom_call.1} parent=1 // loop_body
      %s19 = ssub.s32 %s14, 1
      %s20 = ssub.s32 %s14, 2
      %s27 = sadd.s32 1, %s22
      %p28 = scmp.ge.s32.totalorder %s27, 2
      %s29 = scalar_select %p28, 0, %s27
      %s30 = sadd.s32 1, %s21
      %s31 = scalar_select %p28, %s30, %s21
      %p32 = scmp.ge.s32.totalorder %s31, 2
      %s33 = scalar_select %p32, 0, %s31
      %s34 = ssub.s32 %s21, %s33
      %s35 = ssub.s32 %s22, %s29
      %s36 = sor.u32 %s34, %s35
      %p37 = scmp.eq.s32.totalorder %s36, 0
      %s39 = sadd.s32 %s38, 1
      %s40 = scalar_select %p37, %s38, %s39
      %p43 = pneg %p37
      %p44 = scmp.eq.s32.totalorder %s14, 3
      %p45 = por %p43, %p44
      %p46 = scmp.ne.s32.totalorder %s38, %s41
      %p47 = scmp.eq.s32.totalorder %s14, 0
      %p48 = por %p46, %p47
      %p49 = scmp.ne.s32.totalorder %s38, %s41
      %p50 = scmp.eq.s32.totalorder %s19, 3
      %p51 = por %p49, %p50
      %p52 = scmp.ne.s32.totalorder %s41, %s42
      %p53 = scmp.eq.s32.totalorder %s19, 0
      %p54 = por %p52, %p53
      %p55 = scmp.ne.s32.totalorder %s41, %s42
      %p56 = scmp.eq.s32.totalorder %s20, 3
      %p57 = por %p55, %p56
      %p59 = scmp.ne.s32.totalorder %s42, %s58
      %p60 = scmp.eq.s32.totalorder %s20, 0
      %p61 = por %p59, %p60
      %s62 = ssub.s32 %s21, %s33
      %p63 = scmp.eq.s32.totalorder %s62, 0
      %s65 = sadd.s32 %s64, 1
      %s66 = scalar_select %p63, %s64, %s65
      %p69 = pneg %p63
      %p70 = scmp.eq.s32.totalorder %s14, 3
      %p71 = por %p69, %p70
      %p72 = scmp.ne.s32.totalorder %s64, %s67
      %p73 = scmp.eq.s32.totalorder %s14, 0
      %p74 = por %p72, %p73
      %p75 = scmp.ne.s32.totalorder %s64, %s67
      %p76 = scmp.eq.s32.totalorder %s19, 3
      %p77 = por %p75, %p76
      %p78 = scmp.ne.s32.totalorder %s67, %s68
      %p79 = scmp.eq.s32.totalorder %s19, 0
      %p80 = por %p78, %p79
      %p81 = scmp.ne.s32.totalorder %s67, %s68
      %p82 = scmp.eq.s32.totalorder %s20, 3
      %p83 = por %p81, %p82
      %p85 = scmp.ne.s32.totalorder %s68, %s84
      %p86 = scmp.eq.s32.totalorder %s20, 0
      %p87 = por %p85, %p86
      %s89 = sadd.s32 %s88, 1
      %p92 = scmp.eq.s32.totalorder %s14, 3
      %p93 = scmp.ne.s32.totalorder %s88, %s90
      %p94 = scmp.eq.s32.totalorder %s14, 0
      %p95 = por %p93, %p94
      %p96 = scmp.ne.s32.totalorder %s88, %s90
      %p97 = scmp.eq.s32.totalorder %s19, 3
      %p98 = por %p96, %p97
      %p99 = scmp.ne.s32.totalorder %s90, %s91
      %p100 = scmp.eq.s32.totalorder %s19, 0
      %p101 = por %p99, %p100
      %p102 = scmp.ne.s32.totalorder %s90, %s91
      %p103 = scmp.eq.s32.totalorder %s20, 3
      %p104 = por %p102, %p103
      %p106 = scmp.ne.s32.totalorder %s91, %s105
      %p107 = scmp.eq.s32.totalorder %s20, 0
      %p108 = por %p106, %p107
      %s109 = ssub.s32 %s21, %s33
      %p110 = scmp.eq.s32.totalorder %s109, 0
      %s112 = sadd.s32 %s111, 1
      %s113 = scalar_select %p110, %s111, %s112
      %p116 = pneg %p110
      %p117 = scmp.eq.s32.totalorder %s14, 3
      %p118 = por %p116, %p117
      %p119 = scmp.ne.s32.totalorder %s111, %s114
      %p120 = scmp.eq.s32.totalorder %s14, 0
      %p121 = por %p119, %p120
      %p122 = scmp.ne.s32.totalorder %s111, %s114
      %p123 = scmp.eq.s32.totalorder %s19, 3
      %p124 = por %p122, %p123
      %p125 = scmp.ne.s32.totalorder %s114, %s115
      %p126 = scmp.eq.s32.totalorder %s19, 0
      %p127 = por %p125, %p126
      %p128 = scmp.ne.s32.totalorder %s114, %s115
      %p129 = scmp.eq.s32.totalorder %s20, 3
      %p130 = por %p128, %p129
      %p132 = scmp.ne.s32.totalorder %s115, %s131
      %p133 = scmp.eq.s32.totalorder %s20, 0
      %p134 = por %p132, %p133
      %s135 = ssub.s32 %s21, %s33
      %p136 = scmp.eq.s32.totalorder %s135, 0
      %s138 = sadd.s32 %s137, 1
      %s139 = scalar_select %p136, %s137, %s138
      %p142 = pneg %p136
      %p143 = scmp.eq.s32.totalorder %s14, 3
      %p144 = por %p142, %p143
      %p145 = scmp.ne.s32.totalorder %s137, %s140
      %p146 = scmp.eq.s32.totalorder %s14, 0
      %p147 = por %p145, %p146
      %p148 = scmp.ne.s32.totalorder %s137, %s140
      %p149 = scmp.eq.s32.totalorder %s19, 3
      %p150 = por %p148, %p149
      %p151 = scmp.ne.s32.totalorder %s140, %s141
      %p152 = scmp.eq.s32.totalorder %s19, 0
      %p153 = por %p151, %p152
      %p154 = scmp.ne.s32.totalorder %s140, %s141
      %p155 = scmp.eq.s32.totalorder %s20, 3
      %p156 = por %p154, %p155
      %p158 = scmp.ne.s32.totalorder %s141, %s157
      %p159 = scmp.eq.s32.totalorder %s20, 0
      %p160 = por %p158, %p159
      %p161 = scmp.le.s32.totalorder 1, %s14
      %p162 = scmp.lt.s32.totalorder %s14, 5
      %p163 = pnand %p161, %p162
      %p164 = pneg %p163
      // Predicated region
      $region9: #{tpu_custom_call.1} parent=5 // pred_check
        _
      $region10: #{tpu_custom_call.1} parent=5 // pred_check_branch
        %166 = sbr.rel (%p163) target = $region12
      $region11: #{tpu_custom_call.1} parent=5 // pred_region
        %s167 = ssub.s32 %s14, 1
        // Predicated region
        $region13: #{tpu_custom_call.1} parent=11 // pred_check
          %p168 = pneg %p101
        $region14: #{tpu_custom_call.1} parent=11 // pred_check_branch
          %170 = sbr.rel (%p168) target = $region16
        $region15: #{tpu_custom_call.1} parent=11 // pred_region
          _
        $region16: #{tpu_custom_call.1} parent=11 // pred_fallthru
          _
      $region12: #{tpu_custom_call.1} parent=5 // pred_fallthru
        _
      %p171 = scmp.lt.s32.totalorder %s14, 4
      // Predicated region
      $region17: #{tpu_custom_call.1} parent=5 // pred_check
        %p172 = pneg %p171
      $region18: #{tpu_custom_call.1} parent=5 // pred_check_branch
        %174 = sbr.rel (%p172) target = $region20
      $region19: #{tpu_custom_call.1} parent=5 // pred_region
        // Predicated region
        $region21: #{tpu_custom_call.1} parent=19 // pred_check
          %p175 = pneg %p48
        $region22: #{tpu_custom_call.1} parent=19 // pred_check_branch
          %177 = sbr.rel (%p175) target = $region24
        $region23: #{tpu_custom_call.1} parent=19 // pred_region
          %s178 = sand.u32 %s38, 1
          %s179 = sand.u32 %s38, 1
          %s180 = smul.addr %s179, 64
          %s181 = scalar_lea.vmem [#allocation3], %s180
          %s182 = smul.u32 16, %s21
          %s183 = smul.addr %s182, 2
          %s184 = sadd.s32 %s22, %s183
          %s185 = smul.addr %s184, 4
          %s186 = scalar_lea.vmem %s0, %s185
          // Predicated region
          $region25: #{tpu_custom_call.1} parent=23 // pred_check
            _
          $region26: #{tpu_custom_call.1} parent=23 // pred_check_branch
            %188 = sbr.rel (0) target = $region28
          $region27: #{tpu_custom_call.1} parent=23 // pred_region
            // Predicated region
            $region29: #{tpu_custom_call.1} parent=27 // pred_check
              _
            $region30: #{tpu_custom_call.1} parent=27 // pred_check_branch
              %190 = sbr.rel target = $region32
            $region31: #{tpu_custom_call.1} parent=27 // pred_region
              // Predicated region
              $region44: #{tpu_custom_call.1} parent=31 // pred_check
                _
              $region45: #{tpu_custom_call.1} parent=31 // pred_check_branch
                %235 = sbr.rel (0) target = $region47
              $region46: #{tpu_custom_call.1} parent=31 // pred_region
                loop: start=0, step=1, limit=1
                $region48: #{tpu_custom_call.1} parent=46 // loop_pre_header
                  _
                $region49: #{tpu_custom_call.1} parent=46 // loop_header
                  %s237 = sphi 0, %s241
                  %p238 = scmp.ge.s32.totalorder %s237, 1
                  %s242 = sphi %s186, %s186
                  %s243 = sphi %s181, %s181
                $region50: #{tpu_custom_call.1} parent=46 // loop_header_branch
                  %240 = sbr.rel (%p238) target = $region54
                $region51: #{tpu_custom_call.1} parent=46 // loop_body
                  _
                $region52: #{tpu_custom_call.1} parent=46 // loop_footer
                  %s241 = sadd.s32 1, %s237
                $region53: #{tpu_custom_call.1} parent=46 // loop_footer_branch
                  %236 = sbr.rel target = $region49
                $region54: #{tpu_custom_call.1} parent=46 // loop_exit
                  _
                loop: start=0, step=1, limit=1
                $region55: #{tpu_custom_call.1} parent=46 // loop_pre_header
                  _
                $region56: #{tpu_custom_call.1} parent=46 // loop_header
                  %s246 = sphi 0, %s250
                  %p247 = scmp.ge.s32.totalorder %s246, 1
                  %s251 = sphi %s186, %s186
                  %s252 = sphi %s181, %s181
                $region57: #{tpu_custom_call.1} parent=46 // loop_header_branch
                  %249 = sbr.rel (%p247) target = $region61
                $region58: #{tpu_custom_call.1} parent=46 // loop_body
                  %v253 = vld [vmem:[%s251] sm:$0xf]
                  %254 = vst [vmem:[%s252] sm:$0xf] %v253
                  %v255 = vld [vmem:[%s251 + $0x8] sm:$0xf]
                  %256 = vst [vmem:[%s252 + $0x4] sm:$0xf] %v255
                  %v257 = vld [vmem:[%s251 + $0x10] sm:$0xf]
                  %258 = vst [vmem:[%s252 + $0x8] sm:$0xf] %v257
                  %v259 = vld [vmem:[%s251 + $0x18] sm:$0xf]
                  %260 = vst [vmem:[%s252 + $0xc] sm:$0xf] %v259
                  %v261 = vld [vmem:[%s251 + $0x20] sm:$0xf]
                  %262 = vst [vmem:[%s252 + $0x10] sm:$0xf] %v261
                  %v263 = vld [vmem:[%s251 + $0x28] sm:$0xf]
                  %264 = vst [vmem:[%s252 + $0x14] sm:$0xf] %v263
                  %v265 = vld [vmem:[%s251 + $0x30] sm:$0xf]
                  %266 = vst [vmem:[%s252 + $0x18] sm:$0xf] %v265
                  %v267 = vld [vmem:[%s251 + $0x38] sm:$0xf]
                  %268 = vst [vmem:[%s252 + $0x1c] sm:$0xf] %v267
                  %v269 = vld [vmem:[%s251 + $0x40] sm:$0xf]
                  %270 = vst [vmem:[%s252 + $0x20] sm:$0xf] %v269
                  %v271 = vld [vmem:[%s251 + $0x48] sm:$0xf]
                  %272 = vst [vmem:[%s252 + $0x24] sm:$0xf] %v271
                  %v273 = vld [vmem:[%s251 + $0x50] sm:$0xf]
                  %274 = vst [vmem:[%s252 + $0x28] sm:$0xf] %v273
                  %v275 = vld [vmem:[%s251 + $0x58] sm:$0xf]
                  %276 = vst [vmem:[%s252 + $0x2c] sm:$0xf] %v275
                  %v277 = vld [vmem:[%s251 + $0x60] sm:$0xf]
                  %278 = vst [vmem:[%s252 + $0x30] sm:$0xf] %v277
                  %v279 = vld [vmem:[%s251 + $0x68] sm:$0xf]
                  %280 = vst [vmem:[%s252 + $0x34] sm:$0xf] %v279
                  %v281 = vld [vmem:[%s251 + $0x70] sm:$0xf]
                  %282 = vst [vmem:[%s252 + $0x38] sm:$0xf] %v281
                  %v283 = vld [vmem:[%s251 + $0x78] sm:$0xf]
                  %284 = vst [vmem:[%s252 + $0x3c] sm:$0xf] %v283
                $region59: #{tpu_custom_call.1} parent=46 // loop_footer
                  %s250 = sadd.s32 1, %s246
                $region60: #{tpu_custom_call.1} parent=46 // loop_footer_branch
                  %245 = sbr.rel target = $region56
                $region61: #{tpu_custom_call.1} parent=46 // loop_exit
                  _
              $region47: #{tpu_custom_call.1} parent=31 // pred_fallthru
                _
            $region32: #{tpu_custom_call.1} parent=27 // pred_fallthru
              _
            // Predicated region
            $region33: #{tpu_custom_call.1} parent=27 // pred_check
              _
            $region34: #{tpu_custom_call.1} parent=27 // pred_check_branch
              %192 = sbr.rel (0) target = $region36
            $region35: #{tpu_custom_call.1} parent=27 // pred_region
              loop: start=0, step=1, limit=1
              $region37: #{tpu_custom_call.1} parent=35 // loop_pre_header
                _
              $region38: #{tpu_custom_call.1} parent=35 // loop_header
                %s195 = sphi 0, %s199
                %p196 = scmp.ge.s32.totalorder %s195, 1
                %s200 = sphi %s186, %s186
                %s201 = sphi %s181, %s181
              $region39: #{tpu_custom_call.1} parent=35 // loop_header_branch
                %198 = sbr.rel (%p196) target = $region43
              $region40: #{tpu_custom_call.1} parent=35 // loop_body
                %v202 = vld [vmem:[%s200] sm:$0xf]
                %203 = vst [vmem:[%s201] sm:$0xf] %v202
                %v204 = vld [vmem:[%s200 + $0x8] sm:$0xf]
                %205 = vst [vmem:[%s201 + $0x4] sm:$0xf] %v204
                %v206 = vld [vmem:[%s200 + $0x10] sm:$0xf]
                %207 = vst [vmem:[%s201 + $0x8] sm:$0xf] %v206
                %v208 = vld [vmem:[%s200 + $0x18] sm:$0xf]
                %209 = vst [vmem:[%s201 + $0xc] sm:$0xf] %v208
                %v210 = vld [vmem:[%s200 + $0x20] sm:$0xf]
                %211 = vst [vmem:[%s201 + $0x10] sm:$0xf] %v210
                %v212 = vld [vmem:[%s200 + $0x28] sm:$0xf]
                %213 = vst [vmem:[%s201 + $0x14] sm:$0xf] %v212
                %v214 = vld [vmem:[%s200 + $0x30] sm:$0xf]
                %215 = vst [vmem:[%s201 + $0x18] sm:$0xf] %v214
                %v216 = vld [vmem:[%s200 + $0x38] sm:$0xf]
                %217 = vst [vmem:[%s201 + $0x1c] sm:$0xf] %v216
                %v218 = vld [vmem:[%s200 + $0x40] sm:$0xf]
                %219 = vst [vmem:[%s201 + $0x20] sm:$0xf] %v218
                %v220 = vld [vmem:[%s200 + $0x48] sm:$0xf]
                %221 = vst [vmem:[%s201 + $0x24] sm:$0xf] %v220
                %v222 = vld [vmem:[%s200 + $0x50] sm:$0xf]
                %223 = vst [vmem:[%s201 + $0x28] sm:$0xf] %v222
                %v224 = vld [vmem:[%s200 + $0x58] sm:$0xf]
                %225 = vst [vmem:[%s201 + $0x2c] sm:$0xf] %v224
                %v226 = vld [vmem:[%s200 + $0x60] sm:$0xf]
                %227 = vst [vmem:[%s201 + $0x30] sm:$0xf] %v226
                %v228 = vld [vmem:[%s200 + $0x68] sm:$0xf]
                %229 = vst [vmem:[%s201 + $0x34] sm:$0xf] %v228
                %v230 = vld [vmem:[%s200 + $0x70] sm:$0xf]
                %231 = vst [vmem:[%s201 + $0x38] sm:$0xf] %v230
                %v232 = vld [vmem:[%s200 + $0x78] sm:$0xf]
                %233 = vst [vmem:[%s201 + $0x3c] sm:$0xf] %v232
              $region41: #{tpu_custom_call.1} parent=35 // loop_footer
                %s199 = sadd.s32 1, %s195
              $region42: #{tpu_custom_call.1} parent=35 // loop_footer_branch
                %194 = sbr.rel target = $region38
              $region43: #{tpu_custom_call.1} parent=35 // loop_exit
                _
            $region36: #{tpu_custom_call.1} parent=27 // pred_fallthru
              _
          $region28: #{tpu_custom_call.1} parent=23 // pred_fallthru
            _
          %285 = vnop
        $region24: #{tpu_custom_call.1} parent=19 // pred_fallthru
          _
        // Predicated region
        $region62: #{tpu_custom_call.1} parent=19 // pred_check
          %p286 = pneg %p74
        $region63: #{tpu_custom_call.1} parent=19 // pred_check_branch
          %288 = sbr.rel (%p286) target = $region65
        $region64: #{tpu_custom_call.1} parent=19 // pred_region
          %s289 = smul.u32 16, %s21
          %p290 = scmp.lt.s32.totalorder %s289, 31
          %s291 = scalar_select %p290, %s289, 31
          %s292 = smul.addr %s291, 8
          %s293 = scalar_lea.vmem %s1, %s292
          %s294 = smul.u32 16, %s21
        $region65: #{tpu_custom_call.1} parent=19 // pred_fallthru
          _
      $region20: #{tpu_custom_call.1} parent=5 // pred_fallthru
        _
      %p295 = scmp.le.s32.totalorder 1, %s14
      %p296 = scmp.lt.s32.totalorder %s14, 5
      %p297 = pnand %p295, %p296
      %p298 = pneg %p297
      // Predicated region
      $region66: #{tpu_custom_call.1} parent=5 // pred_check
        _
      $region67: #{tpu_custom_call.1} parent=5 // pred_check_branch
        %300 = sbr.rel (%p297) target = $region69
      $region68: #{tpu_custom_call.1} parent=5 // pred_region
        %s301 = ssub.s32 %s14, 1
        %s302 = sand.u32 %s41, 1
        %s303 = sand.u32 %s41, 1
        %s304 = smul.addr %s303, 64
        %s305 = scalar_lea.vmem [#allocation3], %s304
        // Predicated region
        $region70: #{tpu_custom_call.1} parent=68 // pred_check
          %p306 = pneg %p54
        $region71: #{tpu_custom_call.1} parent=68 // pred_check_branch
          %308 = sbr.rel (%p306) target = $region73
        $region72: #{tpu_custom_call.1} parent=68 // pred_region
          _
        $region73: #{tpu_custom_call.1} parent=68 // pred_fallthru
          _
        %s309 = sand.u32 %s41, 1
        %s310 = sand.u32 %s41, 1
        %s311 = smul.addr %s310, 64
        %s312 = scalar_lea.vmem [#allocation3], %s311
        %p313 = pneg %p54
        %p314 = pneg %p51
        %s315 = smul.u32 16, %s23
        %p316 = scmp.lt.s32.totalorder %s315, 31
        %s317 = scalar_select %p316, %s315, 31
        %s318 = smul.addr %s317, 8
        %s319 = scalar_lea.vmem %s1, %s318
        %p320 = pneg %p80
        %p321 = pneg %p77
        %p322 = pneg %p101
        %p323 = pneg %p98
        %p324 = pneg %p127
        %p325 = pneg %p124
        %s326 = smul.u32 16, %s23
        %p327 = scmp.lt.s32.totalorder %s326, 31
        %s328 = scalar_select %p327, %s326, 31
        %s329 = smul.addr %s328, 8
        %s330 = scalar_lea.vmem %s3, %s329
        %p331 = pneg %p153
        %p332 = pneg %p150
        %s333 = sand.u32 %s140, 1
        %s334 = scalar_lea.sflag [#allocation5], %s333
        %s335 = sand.u32 %s140, 1
        %s336 = smul.addr %s335, 64
        %s337 = scalar_lea.vmem [#allocation4], %s336
        %s338 = smul.u32 16, %s23
        %s339 = smul.u32 16, %s23
        %p340 = scmp.lt.s32.totalorder %s339, 31
        %s341 = scalar_select %p340, %s339, 31
        %s342 = smul.addr %s341, 8
        %s343 = scalar_lea.vmem %s1, %s342
        %s344 = smul.u32 16, %s23
        %s345 = smul.u32 16, %s23
        %p346 = scmp.lt.s32.totalorder %s345, 31
        %s347 = scalar_select %p346, %s345, 31
        %s348 = smul.addr %s347, 8
        %s349 = scalar_lea.vmem %s3, %s348
        %s350 = smul.u32 16, %s23
        %s351 = smul.u32 16, %s23
        %p355 = scmp.eq.s32.totalorder %s24, 0
        // Predicated region
        $region74: #{tpu_custom_call.1} parent=68 // pred_check
          %p356 = pneg %p355
        $region75: #{tpu_custom_call.1} parent=68 // pred_check_branch
          %358 = sbr.rel (%p356) target = $region77
        $region76: #{tpu_custom_call.1} parent=68 // pred_region
          %vm359 = vcmask 7168
          %360 = vst.msk [vmem:[#allocation2] sm:$0xff] %vm359, 0.0
          %361 = vst.msk [vmem:[#allocation2 + $0x8] sm:$0xff] %vm359, 0.0
          %362 = vst.msk [vmem:[#allocation2 + $0x10] sm:$0xff] %vm359, 0.0
          %363 = vst.msk [vmem:[#allocation2 + $0x18] sm:$0xff] %vm359, 0.0
          %364 = vst.msk [vmem:[#allocation2 + $0x20] sm:$0xff] %vm359, 0.0
          %365 = vst.msk [vmem:[#allocation2 + $0x28] sm:$0xff] %vm359, 0.0
          %366 = vst.msk [vmem:[#allocation2 + $0x30] sm:$0xff] %vm359, 0.0
          %367 = vst.msk [vmem:[#allocation2 + $0x38] sm:$0xff] %vm359, 0.0
          %368 = vst.msk [vmem:[#allocation2 + $0x40] sm:$0xff] %vm359, 0.0
          %369 = vst.msk [vmem:[#allocation2 + $0x48] sm:$0xff] %vm359, 0.0
          %370 = vst.msk [vmem:[#allocation2 + $0x50] sm:$0xff] %vm359, 0.0
          %371 = vst.msk [vmem:[#allocation2 + $0x58] sm:$0xff] %vm359, 0.0
          %372 = vst.msk [vmem:[#allocation2 + $0x60] sm:$0xff] %vm359, 0.0
          %373 = vst.msk [vmem:[#allocation2 + $0x68] sm:$0xff] %vm359, 0.0
          %374 = vst.msk [vmem:[#allocation2 + $0x70] sm:$0xff] %vm359, 0.0
          %375 = vst.msk [vmem:[#allocation2 + $0x78] sm:$0xff] %vm359, 0.0
        $region77: #{tpu_custom_call.1} parent=68 // pred_fallthru
          _
        %v376 = vld [vmem:[#allocation2] sm:$0xff]
        %v377 = vld [vmem:[#allocation2 + $0x8] sm:$0xff]
        %v378 = vld [vmem:[#allocation2 + $0x10] sm:$0xff]
        %v379 = vld [vmem:[#allocation2 + $0x18] sm:$0xff]
        %v380 = vld [vmem:[#allocation2 + $0x20] sm:$0xff]
        %v381 = vld [vmem:[#allocation2 + $0x28] sm:$0xff]
        %v382 = vld [vmem:[#allocation2 + $0x30] sm:$0xff]
        %v383 = vld [vmem:[#allocation2 + $0x38] sm:$0xff]
        %v384 = vld [vmem:[#allocation2 + $0x40] sm:$0xff]
        %v385 = vld [vmem:[#allocation2 + $0x48] sm:$0xff]
        %v386 = vld [vmem:[#allocation2 + $0x50] sm:$0xff]
        %v387 = vld [vmem:[#allocation2 + $0x58] sm:$0xff]
        %v388 = vld [vmem:[#allocation2 + $0x60] sm:$0xff]
        %v389 = vld [vmem:[#allocation2 + $0x68] sm:$0xff]
        %v390 = vld [vmem:[#allocation2 + $0x70] sm:$0xff]
        %v391 = vld [vmem:[#allocation2 + $0x78] sm:$0xff]
        %v392 = vld [vmem:[%s305] sm:$0xf]
        %v393 = vld [vmem:[%s305 + $0x4] sm:$0xf]
        %v394 = vld [vmem:[%s305 + $0x8] sm:$0xf]
        %v395 = vld [vmem:[%s305 + $0xc] sm:$0xf]
        %v396 = vld [vmem:[%s305 + $0x10] sm:$0xf]
        %v397 = vld [vmem:[%s305 + $0x14] sm:$0xf]
        %v398 = vld [vmem:[%s305 + $0x18] sm:$0xf]
        %v399 = vld [vmem:[%s305 + $0x1c] sm:$0xf]
        %v400 = vld [vmem:[%s305 + $0x20] sm:$0xf]
        %v401 = vld [vmem:[%s305 + $0x24] sm:$0xf]
        %v402 = vld [vmem:[%s305 + $0x28] sm:$0xf]
        %v403 = vld [vmem:[%s305 + $0x2c] sm:$0xf]
        %v404 = vld [vmem:[%s305 + $0x30] sm:$0xf]
        %v405 = vld [vmem:[%s305 + $0x34] sm:$0xf]
        %v406 = vld [vmem:[%s305 + $0x38] sm:$0xf]
        %v407 = vld [vmem:[%s305 + $0x3c] sm:$0xf]
        %vm408 = vcmp.gt.bf16.partialorder %v392, 0
        %vm409 = vcmp.gt.bf16.partialorder %v393, 0
        %vm410 = vcmp.gt.bf16.partialorder %v394, 0
        %vm411 = vcmp.gt.bf16.partialorder %v395, 0
        %vm412 = vcmp.gt.bf16.partialorder %v396, 0
        %vm413 = vcmp.gt.bf16.partialorder %v397, 0
        %vm414 = vcmp.gt.bf16.partialorder %v398, 0
        %vm415 = vcmp.gt.bf16.partialorder %v399, 0
        %vm416 = vcmp.gt.bf16.partialorder %v400, 0
        %vm417 = vcmp.gt.bf16.partialorder %v401, 0
        %vm418 = vcmp.gt.bf16.partialorder %v402, 0
        %vm419 = vcmp.gt.bf16.partialorder %v403, 0
        %vm420 = vcmp.gt.bf16.partialorder %v404, 0
        %vm421 = vcmp.gt.bf16.partialorder %v405, 0
        %vm422 = vcmp.gt.bf16.partialorder %v406, 0
        %vm423 = vcmp.gt.bf16.partialorder %v407, 0
        %v424 = vsel %vm408, 65537, 0
        %v425 = vsel %vm409, 65537, 0
        %v426 = vsel %vm410, 65537, 0
        %v427 = vsel %vm411, 65537, 0
        %v428 = vsel %vm412, 65537, 0
        %v429 = vsel %vm413, 65537, 0
        %v430 = vsel %vm414, 65537, 0
        %v431 = vsel %vm415, 65537, 0
        %v432 = vsel %vm416, 65537, 0
        %v433 = vsel %vm417, 65537, 0
        %v434 = vsel %vm418, 65537, 0
        %v435 = vsel %vm419, 65537, 0
        %v436 = vsel %vm420, 65537, 0
        %v437 = vsel %vm421, 65537, 0
        %v438 = vsel %vm422, 65537, 0
        %v439 = vsel %vm423, 65537, 0
        %v440 = vunpack.c.l.b16 %v424
        %v441 = vunpack.c.l.b16 %v425
        %v442 = vunpack.c.l.b16 %v426
        %v443 = vunpack.c.l.b16 %v427
        %v444 = vunpack.c.l.b16 %v428
        %v445 = vunpack.c.l.b16 %v429
        %v446 = vunpack.c.l.b16 %v430
        %v447 = vunpack.c.l.b16 %v431
        %v448 = vunpack.c.l.b16 %v432
        %v449 = vunpack.c.l.b16 %v433
        %v450 = vunpack.c.l.b16 %v434
        %v451 = vunpack.c.l.b16 %v435
        %v452 = vunpack.c.l.b16 %v436
        %v453 = vunpack.c.l.b16 %v437
        %v454 = vunpack.c.l.b16 %v438
        %v455 = vunpack.c.l.b16 %v439
        %vm456 = vcmp.ne.s32.totalorder %v440, 0
        %vm457 = vcmp.ne.s32.totalorder %v441, 0
        %vm458 = vcmp.ne.s32.totalorder %v442, 0
        %vm459 = vcmp.ne.s32.totalorder %v443, 0
        %vm460 = vcmp.ne.s32.totalorder %v444, 0
        %vm461 = vcmp.ne.s32.totalorder %v445, 0
        %vm462 = vcmp.ne.s32.totalorder %v446, 0
        %vm463 = vcmp.ne.s32.totalorder %v447, 0
        %vm464 = vcmp.ne.s32.totalorder %v448, 0
        %vm465 = vcmp.ne.s32.totalorder %v449, 0
        %vm466 = vcmp.ne.s32.totalorder %v450, 0
        %vm467 = vcmp.ne.s32.totalorder %v451, 0
        %vm468 = vcmp.ne.s32.totalorder %v452, 0
        %vm469 = vcmp.ne.s32.totalorder %v453, 0
        %vm470 = vcmp.ne.s32.totalorder %v454, 0
        %vm471 = vcmp.ne.s32.totalorder %v455, 0
        %v472 = vsel %vm456, 1, 0
        %v473 = vsel %vm457, 1, 0
        %v474 = vsel %vm458, 1, 0
        %v475 = vsel %vm459, 1, 0
        %v476 = vsel %vm460, 1, 0
        %v477 = vsel %vm461, 1, 0
        %v478 = vsel %vm462, 1, 0
        %v479 = vsel %vm463, 1, 0
        %v480 = vsel %vm464, 1, 0
        %v481 = vsel %vm465, 1, 0
        %v482 = vsel %vm466, 1, 0
        %v483 = vsel %vm467, 1, 0
        %v484 = vsel %vm468, 1, 0
        %v485 = vsel %vm469, 1, 0
        %v486 = vsel %vm470, 1, 0
        %v487 = vsel %vm471, 1, 0
        %v488 = vcvt.s32.f32 %v472
        %v489 = vcvt.s32.f32 %v473
        %v490 = vcvt.s32.f32 %v474
        %v491 = vcvt.s32.f32 %v475
        %v492 = vcvt.s32.f32 %v476
        %v493 = vcvt.s32.f32 %v477
        %v494 = vcvt.s32.f32 %v478
        %v495 = vcvt.s32.f32 %v479
        %v496 = vcvt.s32.f32 %v480
        %v497 = vcvt.s32.f32 %v481
        %v498 = vcvt.s32.f32 %v482
        %v499 = vcvt.s32.f32 %v483
        %v500 = vcvt.s32.f32 %v484
        %v501 = vcvt.s32.f32 %v485
        %v502 = vcvt.s32.f32 %v486
        %v503 = vcvt.s32.f32 %v487
        %504 = vadd.xlane.f32.xlu0 %v488
        %v505 = vpop.xlane.xlu0 %504
        %506 = vadd.xlane.f32.xlu0 %v489
        %v507 = vpop.xlane.xlu0 %506
        %508 = vadd.xlane.f32.xlu0 %v490
        %v509 = vpop.xlane.xlu0 %508
        %510 = vadd.xlane.f32.xlu0 %v491
        %v511 = vpop.xlane.xlu0 %510
        %512 = vadd.xlane.f32.xlu0 %v492
        %v513 = vpop.xlane.xlu0 %512
        %514 = vadd.xlane.f32.xlu0 %v493
        %v515 = vpop.xlane.xlu0 %514
        %516 = vadd.xlane.f32.xlu0 %v494
        %v517 = vpop.xlane.xlu0 %516
        %518 = vadd.xlane.f32.xlu0 %v495
        %v519 = vpop.xlane.xlu0 %518
        %520 = vadd.xlane.f32.xlu0 %v496
        %v521 = vpop.xlane.xlu0 %520
        %522 = vadd.xlane.f32.xlu0 %v497
        %v523 = vpop.xlane.xlu0 %522
        %524 = vadd.xlane.f32.xlu0 %v498
        %v525 = vpop.xlane.xlu0 %524
        %526 = vadd.xlane.f32.xlu0 %v499
        %v527 = vpop.xlane.xlu0 %526
        %528 = vadd.xlane.f32.xlu0 %v500
        %v529 = vpop.xlane.xlu0 %528
        %530 = vadd.xlane.f32.xlu0 %v501
        %v531 = vpop.xlane.xlu0 %530
        %532 = vadd.xlane.f32.xlu0 %v502
        %v533 = vpop.xlane.xlu0 %532
        %534 = vadd.xlane.f32.xlu0 %v503
        %v535 = vpop.xlane.xlu0 %534
        %v536 = vadd.f32 %v376, %v505
        %v537 = vadd.f32 %v377, %v507
        %v538 = vadd.f32 %v378, %v509
        %v539 = vadd.f32 %v379, %v511
        %v540 = vadd.f32 %v380, %v513
        %v541 = vadd.f32 %v381, %v515
        %v542 = vadd.f32 %v382, %v517
        %v543 = vadd.f32 %v383, %v519
        %v544 = vadd.f32 %v384, %v521
        %v545 = vadd.f32 %v385, %v523
        %v546 = vadd.f32 %v386, %v525
        %v547 = vadd.f32 %v387, %v527
        %v548 = vadd.f32 %v388, %v529
        %v549 = vadd.f32 %v389, %v531
        %v550 = vadd.f32 %v390, %v533
        %v551 = vadd.f32 %v391, %v535
        %vm552 = vcmask 7168
        %553 = vst.msk [vmem:[#allocation2] sm:$0xff] %vm552, %v536
        %554 = vst.msk [vmem:[#allocation2 + $0x8] sm:$0xff] %vm552, %v537
        %555 = vst.msk [vmem:[#allocation2 + $0x10] sm:$0xff] %vm552, %v538
        %556 = vst.msk [vmem:[#allocation2 + $0x18] sm:$0xff] %vm552, %v539
        %557 = vst.msk [vmem:[#allocation2 + $0x20] sm:$0xff] %vm552, %v540
        %558 = vst.msk [vmem:[#allocation2 + $0x28] sm:$0xff] %vm552, %v541
        %559 = vst.msk [vmem:[#allocation2 + $0x30] sm:$0xff] %vm552, %v542
        %560 = vst.msk [vmem:[#allocation2 + $0x38] sm:$0xff] %vm552, %v543
        %561 = vst.msk [vmem:[#allocation2 + $0x40] sm:$0xff] %vm552, %v544
        %562 = vst.msk [vmem:[#allocation2 + $0x48] sm:$0xff] %vm552, %v545
        %563 = vst.msk [vmem:[#allocation2 + $0x50] sm:$0xff] %vm552, %v546
        %564 = vst.msk [vmem:[#allocation2 + $0x58] sm:$0xff] %vm552, %v547
        %565 = vst.msk [vmem:[#allocation2 + $0x60] sm:$0xff] %vm552, %v548
        %566 = vst.msk [vmem:[#allocation2 + $0x68] sm:$0xff] %vm552, %v549
        %567 = vst.msk [vmem:[#allocation2 + $0x70] sm:$0xff] %vm552, %v550
        %568 = vst.msk [vmem:[#allocation2 + $0x78] sm:$0xff] %vm552, %v551
        %p569 = scmp.eq.s32.totalorder %s24, 1
        // Predicated region
        $region78: #{tpu_custom_call.1} parent=68 // pred_check
          %p570 = pneg %p569
        $region79: #{tpu_custom_call.1} parent=68 // pred_check_branch
          %572 = sbr.rel (%p570) target = $region81
        $region80: #{tpu_custom_call.1} parent=68 // pred_region
          %v573 = vld [vmem:[#allocation2] sm:$0xff]
          %v574 = vld [vmem:[#allocation2 + $0x8] sm:$0xff]
          %v575 = vld [vmem:[#allocation2 + $0x10] sm:$0xff]
          %v576 = vld [vmem:[#allocation2 + $0x18] sm:$0xff]
          %v577 = vld [vmem:[#allocation2 + $0x20] sm:$0xff]
          %v578 = vld [vmem:[#allocation2 + $0x28] sm:$0xff]
          %v579 = vld [vmem:[#allocation2 + $0x30] sm:$0xff]
          %v580 = vld [vmem:[#allocation2 + $0x38] sm:$0xff]
          %v581 = vld [vmem:[#allocation2 + $0x40] sm:$0xff]
          %v582 = vld [vmem:[#allocation2 + $0x48] sm:$0xff]
          %v583 = vld [vmem:[#allocation2 + $0x50] sm:$0xff]
          %v584 = vld [vmem:[#allocation2 + $0x58] sm:$0xff]
          %v585 = vld [vmem:[#allocation2 + $0x60] sm:$0xff]
          %v586 = vld [vmem:[#allocation2 + $0x68] sm:$0xff]
          %v587 = vld [vmem:[#allocation2 + $0x70] sm:$0xff]
          %v588 = vld [vmem:[#allocation2 + $0x78] sm:$0xff]
          %v589 = vrsqrt.pop %v573
          %v590 = vrsqrt.pop %v574
          %v591 = vrsqrt.pop %v575
          %v592 = vrsqrt.pop %v576
          %v593 = vrsqrt.pop %v577
          %v594 = vrsqrt.pop %v578
          %v595 = vrsqrt.pop %v579
          %v596 = vrsqrt.pop %v580
          %v597 = vrsqrt.pop %v581
          %v598 = vrsqrt.pop %v582
          %v599 = vrsqrt.pop %v583
          %v600 = vrsqrt.pop %v584
          %v601 = vrsqrt.pop %v585
          %v602 = vrsqrt.pop %v586
          %v603 = vrsqrt.pop %v587
          %v604 = vrsqrt.pop %v588
          %605 = vst.msk [vmem:[%s349] sm:$0xff] %vm552, %v589
          %606 = vst.msk [vmem:[%s349 + $0x8] sm:$0xff] %vm552, %v590
          %607 = vst.msk [vmem:[%s349 + $0x10] sm:$0xff] %vm552, %v591
          %608 = vst.msk [vmem:[%s349 + $0x18] sm:$0xff] %vm552, %v592
          %609 = vst.msk [vmem:[%s349 + $0x20] sm:$0xff] %vm552, %v593
          %610 = vst.msk [vmem:[%s349 + $0x28] sm:$0xff] %vm552, %v594
          %611 = vst.msk [vmem:[%s349 + $0x30] sm:$0xff] %vm552, %v595
          %612 = vst.msk [vmem:[%s349 + $0x38] sm:$0xff] %vm552, %v596
          %613 = vst.msk [vmem:[%s349 + $0x40] sm:$0xff] %vm552, %v597
          %614 = vst.msk [vmem:[%s349 + $0x48] sm:$0xff] %vm552, %v598
          %615 = vst.msk [vmem:[%s349 + $0x50] sm:$0xff] %vm552, %v599
          %616 = vst.msk [vmem:[%s349 + $0x58] sm:$0xff] %vm552, %v600
          %617 = vst.msk [vmem:[%s349 + $0x60] sm:$0xff] %vm552, %v601
          %618 = vst.msk [vmem:[%s349 + $0x68] sm:$0xff] %vm552, %v602
          %619 = vst.msk [vmem:[%s349 + $0x70] sm:$0xff] %vm552, %v603
          %620 = vst.msk [vmem:[%s349 + $0x78] sm:$0xff] %vm552, %v604
          %v621 = vld [vmem:[%s343] sm:$0xff]
          %v622 = vld [vmem:[%s343 + $0x8] sm:$0xff]
          %v623 = vld [vmem:[%s343 + $0x10] sm:$0xff]
          %v624 = vld [vmem:[%s343 + $0x18] sm:$0xff]
          %v625 = vld [vmem:[%s343 + $0x20] sm:$0xff]
          %v626 = vld [vmem:[%s343 + $0x28] sm:$0xff]
          %v627 = vld [vmem:[%s343 + $0x30] sm:$0xff]
          %v628 = vld [vmem:[%s343 + $0x38] sm:$0xff]
          %v629 = vld [vmem:[%s343 + $0x40] sm:$0xff]
          %v630 = vld [vmem:[%s343 + $0x48] sm:$0xff]
          %v631 = vld [vmem:[%s343 + $0x50] sm:$0xff]
          %v632 = vld [vmem:[%s343 + $0x58] sm:$0xff]
          %v633 = vld [vmem:[%s343 + $0x60] sm:$0xff]
          %v634 = vld [vmem:[%s343 + $0x68] sm:$0xff]
          %v635 = vld [vmem:[%s343 + $0x70] sm:$0xff]
          %v636 = vld [vmem:[%s343 + $0x78] sm:$0xff]
          %v637 = vld [vmem:[%s2] sm:$0xff]
          %v638 = vld [vmem:[%s2 + $0x8] sm:$0xff]
          %v639 = vld [vmem:[%s2 + $0x10] sm:$0xff]
          %v640 = vld [vmem:[%s2 + $0x18] sm:$0xff]
          %vm641 = vcmask 261120
          %v643 = vsel %vm641, %v621, 0
          %v646 = vsel %vm641, %v622, 0
          %v649 = vsel %vm641, %v623, 0
          %v652 = vsel %vm641, %v624, 0
          %v655 = vsel %vm641, %v625, 0
          %v658 = vsel %vm641, %v626, 0
          %v661 = vsel %vm641, %v627, 0
          %v664 = vsel %vm641, %v628, 0
          %v667 = vsel %vm641, %v629, 0
          %v670 = vsel %vm641, %v630, 0
          %v673 = vsel %vm641, %v631, 0
          %v676 = vsel %vm641, %v632, 0
          %v679 = vsel %vm641, %v633, 0
          %v682 = vsel %vm641, %v634, 0
          %v685 = vsel %vm641, %v635, 0
          %v688 = vsel %vm641, %v636, 0
          %690 = vmatprep.subr.mxu0 0.0
          %691 = vmatpush1.msra.mxu0 %v637
          %692 = vmatprep.subr.mxu0 0.0
          %693 = vmatpush1.msra.mxu0 %v638
          %694 = vmatprep.subr.mxu0 0.0
          %695 = vmatpush1.msra.mxu0 %v639
          %696 = vmatprep.subr.mxu0 0.0
          %697 = vmatpush1.msra.mxu0 %v640
          %698 = vmatprep.subr.mxu0 0.0
          %699 = vmatpush1.msra.mxu0 0.0
          %700 = vmatprep.subr.mxu0 0.0
          %701 = vmatpush1.msra.mxu0 0.0
          %702 = vmatprep.subr.mxu0 0.0
          %703 = vmatpush1.msra.mxu0 0.0
          %704 = vmatprep.subr.mxu0 0.0
          %705 = vmatpush1.msra.mxu0 0.0
          %706 = vmatprep.subr.mxu0 0.0
          %707 = vmatpush1.msra.mxu0 0.0
          %708 = vmatprep.subr.mxu0 0.0
          %709 = vmatpush1.msra.mxu0 0.0
          %710 = vmatprep.subr.mxu0 0.0
          %711 = vmatpush1.msra.mxu0 0.0
          %712 = vmatprep.subr.mxu0 0.0
          %713 = vmatpush1.msra.mxu0 0.0
          %714 = vmatprep.subr.mxu0 0.0
          %715 = vmatpush1.msra.mxu0 0.0
          %716 = vmatprep.subr.mxu0 0.0
          %717 = vmatpush1.msra.mxu0 0.0
          %718 = vmatprep.subr.mxu0 0.0
          %719 = vmatpush1.msra.mxu0 0.0
          %720 = vmatprep.subr.mxu0 0.0
          %721 = vmatpush1.msra.mxu0 0.0
          %722 = vmatprep.subr.mxu0 0.0
          %723 = vmatpush1.msra.mxu0 0.0
          %724 = vmatprep.subr.mxu0 0.0
          %725 = vmatpush1.msra.mxu0 0.0
          %726 = vmatprep.subr.mxu0 0.0
          %727 = vmatpush1.msra.mxu0 0.0
          %728 = vmatprep.subr.mxu0 0.0
          %729 = vmatpush1.msra.mxu0 0.0
          %730 = vmatprep.subr.mxu0 0.0
          %731 = vmatpush1.msra.mxu0 0.0
          %732 = vmatprep.subr.mxu0 0.0
          %733 = vmatpush1.msra.mxu0 0.0
          %734 = vmatprep.subr.mxu0 0.0
          %735 = vmatpush1.msra.mxu0 0.0
          %736 = vmatprep.subr.mxu0 0.0
          %737 = vmatpush1.msra.mxu0 0.0
          %738 = vmatprep.subr.mxu0 0.0
          %739 = vmatpush1.msra.mxu0 0.0
          %740 = vmatprep.subr.mxu0 0.0
          %741 = vmatpush1.msra.mxu0 0.0
          %742 = vmatprep.subr.mxu0 0.0
          %743 = vmatpush1.msra.mxu0 0.0
          %744 = vmatprep.subr.mxu0 0.0
          %745 = vmatpush1.msra.mxu0 0.0
          %746 = vmatprep.subr.mxu0 0.0
          %747 = vmatpush1.msra.mxu0 0.0
          %748 = vmatprep.subr.mxu0 0.0
          %749 = vmatpush1.msra.mxu0 0.0
          %750 = vmatprep.subr.mxu0 0.0
          %751 = vmatpush1.msra.mxu0 0.0
          %752 = vmatprep.subr.mxu0 0.0
          %753 = vmatpush1.msra.mxu0 0.0
          %754 = vmatprep.mubr.f32.mxu0 0.0
          %755 = vmatmul.mubr.f32.gmra.mrb[0].mxu0 %v643
          %v756 = vpop.f32.mrb[0].mxu0
          %v757 = vadd.f32 0.0, %v756
          %v758 = vpop.f32.mrb[0].mxu0
          %759 = vmatprep.mubr.f32.mxu0 0.0
          %760 = vmatmul.mubr.f32.gmra.mrb[0].mxu0 %v646
          %v761 = vpop.f32.mrb[0].mxu0
          %v762 = vadd.f32 0.0, %v761
          %v763 = vpop.f32.mrb[0].mxu0
          %764 = vmatprep.mubr.f32.mxu0 0.0
          %765 = vmatmul.mubr.f32.gmra.mrb[0].mxu0 %v649
          %v766 = vpop.f32.mrb[0].mxu0
          %v767 = vadd.f32 0.0, %v766
          %v768 = vpop.f32.mrb[0].mxu0
          %769 = vmatprep.mubr.f32.mxu0 0.0
          %770 = vmatmul.mubr.f32.gmra.mrb[0].mxu0 %v652
          %v771 = vpop.f32.mrb[0].mxu0
          %v772 = vadd.f32 0.0, %v771
          %v773 = vpop.f32.mrb[0].mxu0
          %774 = vmatprep.mubr.f32.mxu0 0.0
          %775 = vmatmul.mubr.f32.gmra.mrb[0].mxu0 %v655
          %v776 = vpop.f32.mrb[0].mxu0
          %v777 = vadd.f32 0.0, %v776
          %v778 = vpop.f32.mrb[0].mxu0
          %779 = vmatprep.mubr.f32.mxu0 0.0
          %780 = vmatmul.mubr.f32.gmra.mrb[0].mxu0 %v658
          %v781 = vpop.f32.mrb[0].mxu0
          %v782 = vadd.f32 0.0, %v781
          %v783 = vpop.f32.mrb[0].mxu0
          %784 = vmatprep.mubr.f32.mxu0 0.0
          %785 = vmatmul.mubr.f32.gmra.mrb[0].mxu0 %v661
          %v786 = vpop.f32.mrb[0].mxu0
          %v787 = vadd.f32 0.0, %v786
          %v788 = vpop.f32.mrb[0].mxu0
          %789 = vmatprep.mubr.f32.mxu0 0.0
          %790 = vmatmul.mubr.f32.gmra.mrb[0].mxu0 %v664
          %v791 = vpop.f32.mrb[0].mxu0
          %v792 = vadd.f32 0.0, %v791
          %v793 = vpop.f32.mrb[0].mxu0
          %794 = vmatprep.mubr.f32.mxu0 0.0
          %795 = vmatmul.mubr.f32.gmra.mrb[0].mxu0 %v667
          %v796 = vpop.f32.mrb[0].mxu0
          %v797 = vadd.f32 0.0, %v796
          %v798 = vpop.f32.mrb[0].mxu0
          %799 = vmatprep.mubr.f32.mxu0 0.0
          %800 = vmatmul.mubr.f32.gmra.mrb[0].mxu0 %v670
          %v801 = vpop.f32.mrb[0].mxu0
          %v802 = vadd.f32 0.0, %v801
          %v803 = vpop.f32.mrb[0].mxu0
          %804 = vmatprep.mubr.f32.mxu0 0.0
          %805 = vmatmul.mubr.f32.gmra.mrb[0].mxu0 %v673
          %v806 = vpop.f32.mrb[0].mxu0
          %v807 = vadd.f32 0.0, %v806
          %v808 = vpop.f32.mrb[0].mxu0
          %809 = vmatprep.mubr.f32.mxu0 0.0
          %810 = vmatmul.mubr.f32.gmra.mrb[0].mxu0 %v676
          %v811 = vpop.f32.mrb[0].mxu0
          %v812 = vadd.f32 0.0, %v811
          %v813 = vpop.f32.mrb[0].mxu0
          %814 = vmatprep.mubr.f32.mxu0 0.0
          %815 = vmatmul.mubr.f32.gmra.mrb[0].mxu0 %v679
          %v816 = vpop.f32.mrb[0].mxu0
          %v817 = vadd.f32 0.0, %v816
          %v818 = vpop.f32.mrb[0].mxu0
          %819 = vmatprep.mubr.f32.mxu0 0.0
          %820 = vmatmul.mubr.f32.gmra.mrb[0].mxu0 %v682
          %v821 = vpop.f32.mrb[0].mxu0
          %v822 = vadd.f32 0.0, %v821
          %v823 = vpop.f32.mrb[0].mxu0
          %824 = vmatprep.mubr.f32.mxu0 0.0
          %825 = vmatmul.mubr.f32.gmra.mrb[0].mxu0 %v685
          %v826 = vpop.f32.mrb[0].mxu0
          %v827 = vadd.f32 0.0, %v826
          %v828 = vpop.f32.mrb[0].mxu0
          %829 = vmatprep.mubr.f32.mxu0 0.0
          %830 = vmatmul.mubr.f32.gmra.mrb[0].mxu0 %v688
          %v831 = vpop.f32.mrb[0].mxu0
          %v832 = vadd.f32 0.0, %v831
          %v833 = vpop.f32.mrb[0].mxu0
          %834 = vdwg.mxu0
          %836 = vset.pattern.permute.xlu0 0
          %837 = vperm.xlu0 %836, %v589
          %v838 = vpop.permute.xlu0 %837
          %841 = vset.pattern.permute.xlu0 0
          %842 = vperm.xlu0 %841, %v590
          %v843 = vpop.permute.xlu0 %842
          %846 = vset.pattern.permute.xlu0 0
          %847 = vperm.xlu0 %846, %v591
          %v848 = vpop.permute.xlu0 %847
          %851 = vset.pattern.permute.xlu0 0
          %852 = vperm.xlu0 %851, %v592
          %v853 = vpop.permute.xlu0 %852
          %856 = vset.pattern.permute.xlu0 0
          %857 = vperm.xlu0 %856, %v593
          %v858 = vpop.permute.xlu0 %857
          %861 = vset.pattern.permute.xlu0 0
          %862 = vperm.xlu0 %861, %v594
          %v863 = vpop.permute.xlu0 %862
          %866 = vset.pattern.permute.xlu0 0
          %867 = vperm.xlu0 %866, %v595
          %v868 = vpop.permute.xlu0 %867
          %871 = vset.pattern.permute.xlu0 0
          %872 = vperm.xlu0 %871, %v596
          %v873 = vpop.permute.xlu0 %872
          %876 = vset.pattern.permute.xlu0 0
          %877 = vperm.xlu0 %876, %v597
          %v878 = vpop.permute.xlu0 %877
          %881 = vset.pattern.permute.xlu0 0
          %882 = vperm.xlu0 %881, %v598
          %v883 = vpop.permute.xlu0 %882
          %886 = vset.pattern.permute.xlu0 0
          %887 = vperm.xlu0 %886, %v599
          %v888 = vpop.permute.xlu0 %887
          %891 = vset.pattern.permute.xlu0 0
          %892 = vperm.xlu0 %891, %v600
          %v893 = vpop.permute.xlu0 %892
          %896 = vset.pattern.permute.xlu0 0
          %897 = vperm.xlu0 %896, %v601
          %v898 = vpop.permute.xlu0 %897
          %901 = vset.pattern.permute.xlu0 0
          %902 = vperm.xlu0 %901, %v602
          %v903 = vpop.permute.xlu0 %902
          %906 = vset.pattern.permute.xlu0 0
          %907 = vperm.xlu0 %906, %v603
          %v908 = vpop.permute.xlu0 %907
          %911 = vset.pattern.permute.xlu0 0
          %912 = vperm.xlu0 %911, %v604
          %v913 = vpop.permute.xlu0 %912
          %v915 = vmul.f32 %v838, %v757
          %v916 = vmul.f32 %v843, %v762
          %v917 = vmul.f32 %v848, %v767
          %v918 = vmul.f32 %v853, %v772
          %v919 = vmul.f32 %v858, %v777
          %v920 = vmul.f32 %v863, %v782
          %v921 = vmul.f32 %v868, %v787
          %v922 = vmul.f32 %v873, %v792
          %v923 = vmul.f32 %v878, %v797
          %v924 = vmul.f32 %v883, %v802
          %v925 = vmul.f32 %v888, %v807
          %v926 = vmul.f32 %v893, %v812
          %v927 = vmul.f32 %v898, %v817
          %v928 = vmul.f32 %v903, %v822
          %v929 = vmul.f32 %v908, %v827
          %v930 = vmul.f32 %v913, %v832
          %v931 = vpack.c.bf16 %v916, %v915
          %v932 = vpack.c.bf16 %v918, %v917
          %v933 = vpack.c.bf16 %v920, %v919
          %v934 = vpack.c.bf16 %v922, %v921
          %v935 = vpack.c.bf16 %v924, %v923
          %v936 = vpack.c.bf16 %v926, %v925
          %v937 = vpack.c.bf16 %v928, %v927
          %v938 = vpack.c.bf16 %v930, %v929
          %v947 = vunpack.c.l.b16 %v931
          %v948 = vunpack.c.h.b16 %v931
          %v949 = vunpack.c.l.b16 %v932
          %v950 = vunpack.c.h.b16 %v932
          %v951 = vunpack.c.l.b16 %v933
          %v952 = vunpack.c.h.b16 %v933
          %v953 = vunpack.c.l.b16 %v934
          %v954 = vunpack.c.h.b16 %v934
          %v955 = vunpack.c.l.b16 %v935
          %v956 = vunpack.c.h.b16 %v935
          %v957 = vunpack.c.l.b16 %v936
          %v958 = vunpack.c.h.b16 %v936
          %v959 = vunpack.c.l.b16 %v937
          %v960 = vunpack.c.h.b16 %v937
          %v961 = vunpack.c.l.b16 %v938
          %v962 = vunpack.c.h.b16 %v938
          %v963 = vpack.c.b16 %v947, %v947
          %v964 = vpack.c.b16 %v948, %v948
          %v965 = vpack.c.b16 %v949, %v949
          %v966 = vpack.c.b16 %v950, %v950
          %v967 = vpack.c.b16 %v951, %v951
          %v968 = vpack.c.b16 %v952, %v952
          %v969 = vpack.c.b16 %v953, %v953
          %v970 = vpack.c.b16 %v954, %v954
          %v971 = vpack.c.b16 %v955, %v955
          %v972 = vpack.c.b16 %v956, %v956
          %v973 = vpack.c.b16 %v957, %v957
          %v974 = vpack.c.b16 %v958, %v958
          %v975 = vpack.c.b16 %v959, %v959
          %v976 = vpack.c.b16 %v960, %v960
          %v977 = vpack.c.b16 %v961, %v961
          %v978 = vpack.c.b16 %v962, %v962
          %995 = vst [vmem:[%s337] sm:$0xf] %v963
          %996 = vst [vmem:[%s337 + $0x4] sm:$0xf] %v964
          %997 = vst [vmem:[%s337 + $0x8] sm:$0xf] %v965
          %998 = vst [vmem:[%s337 + $0xc] sm:$0xf] %v966
          %999 = vst [vmem:[%s337 + $0x10] sm:$0xf] %v967
          %1000 = vst [vmem:[%s337 + $0x14] sm:$0xf] %v968
          %1001 = vst [vmem:[%s337 + $0x18] sm:$0xf] %v969
          %1002 = vst [vmem:[%s337 + $0x1c] sm:$0xf] %v970
          %1003 = vst [vmem:[%s337 + $0x20] sm:$0xf] %v971
          %1004 = vst [vmem:[%s337 + $0x24] sm:$0xf] %v972
          %1005 = vst [vmem:[%s337 + $0x28] sm:$0xf] %v973
          %1006 = vst [vmem:[%s337 + $0x2c] sm:$0xf] %v974
          %1007 = vst [vmem:[%s337 + $0x30] sm:$0xf] %v975
          %1008 = vst [vmem:[%s337 + $0x34] sm:$0xf] %v976
          %1009 = vst [vmem:[%s337 + $0x38] sm:$0xf] %v977
          %1010 = vst [vmem:[%s337 + $0x3c] sm:$0xf] %v978
        $region81: #{tpu_custom_call.1} parent=68 // pred_fallthru
          _
        %s1011 = smul.u32 16, %s23
        %p1012 = scmp.lt.s32.totalorder %s1011, 31
        %s1013 = scalar_select %p1012, %s1011, 31
        %s1014 = smul.addr %s1013, 8
        %s1015 = scalar_lea.vmem %s3, %s1014
        %s1016 = sand.u32 %s140, 1
        %s1017 = scalar_lea.sflag [#allocation5], %s1016
        %s1018 = sand.u32 %s140, 1
        %s1019 = smul.addr %s1018, 64
        %s1020 = scalar_lea.vmem [#allocation4], %s1019
        // Predicated region
        $region82: #{tpu_custom_call.1} parent=68 // pred_check
          %p1021 = pneg %p124
        $region83: #{tpu_custom_call.1} parent=68 // pred_check_branch
          %1023 = sbr.rel (%p1021) target = $region85
        $region84: #{tpu_custom_call.1} parent=68 // pred_region
          %s1024 = smul.u32 16, %s23
        $region85: #{tpu_custom_call.1} parent=68 // pred_fallthru
          _
        // Predicated region
        $region86: #{tpu_custom_call.1} parent=68 // pred_check
          %p1025 = pneg %p150
        $region87: #{tpu_custom_call.1} parent=68 // pred_check_branch
          %1027 = sbr.rel (%p1025) target = $region89
        $region88: #{tpu_custom_call.1} parent=68 // pred_region
          %s1028 = smul.u32 16, %s23
          %s1030 = ssub.s32 1024, 1024
          %1031 = vsyncadd %s1017, %s1030
          %s1032 = smul.addr %s1028, 64
          %s1033 = scalar_lea.hbm %s4, %s1032
          %s1034 = sshll.u32 %s1020, 4
          %s1035 = int_to_ptr.vmem [resolvable:$true] %s1034
          %1040 = dma.vmem_to_hbm [thread:$0]  %s1035, 1024, %s1033, %s1017, 64, 64, 4
        $region89: #{tpu_custom_call.1} parent=68 // pred_fallthru
          _
      $region69: #{tpu_custom_call.1} parent=5 // pred_fallthru
        _
      %p1041 = scmp.le.s32.totalorder 2, %s14
      // Predicated region
      $region90: #{tpu_custom_call.1} parent=5 // pred_check
        %p1042 = pneg %p1041
      $region91: #{tpu_custom_call.1} parent=5 // pred_check_branch
        %1044 = sbr.rel (%p1042) target = $region93
      $region92: #{tpu_custom_call.1} parent=5 // pred_region
        %s1045 = ssub.s32 %s14, 2
        // Predicated region
        $region94: #{tpu_custom_call.1} parent=92 // pred_check
          %p1046 = pneg %p130
        $region95: #{tpu_custom_call.1} parent=92 // pred_check_branch
          %1048 = sbr.rel (%p1046) target = $region97
        $region96: #{tpu_custom_call.1} parent=92 // pred_region
          %s1049 = smul.u32 16, %s25
          %p1050 = scmp.lt.s32.totalorder %s1049, 31
          %s1051 = scalar_select %p1050, %s1049, 31
          %s1052 = smul.addr %s1051, 8
          %s1053 = scalar_lea.vmem %s3, %s1052
        $region97: #{tpu_custom_call.1} parent=92 // pred_fallthru
          _
        // Predicated region
        $region98: #{tpu_custom_call.1} parent=92 // pred_check
          %p1054 = pneg %p156
        $region99: #{tpu_custom_call.1} parent=92 // pred_check_branch
          %1056 = sbr.rel (%p1054) target = $region101
        $region100: #{tpu_custom_call.1} parent=92 // pred_region
          %s1057 = sand.u32 %s141, 1
          %s1058 = scalar_lea.sflag [#allocation5], %s1057
          %s1059 = sand.u32 %s141, 1
          %s1060 = smul.addr %s1059, 64
          %s1061 = scalar_lea.vmem [#allocation4], %s1060
          %1062 = dma.done %s1058, 1024
        $region101: #{tpu_custom_call.1} parent=92 // pred_fallthru
          _
      $region93: #{tpu_custom_call.1} parent=5 // pred_fallthru
        _
    $region6: #{tpu_custom_call.1} parent=1 // loop_footer
      %s18 = sadd.s32 1, %s14
    $region7: #{tpu_custom_call.1} parent=1 // loop_footer_branch
      %13 = sbr.rel target = $region3
    $region8: #{tpu_custom_call.1} parent=1 // loop_exit
      _
    %1063 = vsyncpa [#allocation5], 1
    %s1064 = scalar_lea.sflag [#allocation5], 1
    %1065 = vsyncpa %s1064, 1

</llo_original>
